<compile_context>
chip_gen: v7x
topology: tpu7x:2x2x1
jax: 0.10.0
libtpu: 0.0.40
codegen_flags: <defaults>
</compile_context>

<pallas_src>
import functools
import math

import jax
import jax.numpy as jnp
from jax.experimental import pallas as pl
from jax.experimental.pallas import tpu as pltpu


def _round_up(x, m):
    return ((x + m - 1) // m) * m


def _gj_kernel(sidx_ref, x_ref, w_ref, b_ref, o_ref, *, feat, n_groups):
    # Fused lane-dense per-species linear:
    #   y = x @ W_fused + b_fused      -> (tm, n_groups * feat)
    y = jnp.dot(x_ref[...], w_ref[...], preferred_element_type=jnp.float32)
    y = y + b_ref[...]                                    # (1, N_fused) broadcast

    # Per-row species-group selection.  sidx == n_real_species selects either a
    # zero-weight padded group or nothing at all -> row stays zero.
    sidx = sidx_ref[...]                                  # (tm, 1) int32
    lane = jax.lax.broadcasted_iota(jnp.int32, y.shape, 1)
    lo = sidx * feat
    sel = (lane >= lo) & (lane < lo + feat)
    y = jnp.where(sel, y, 0.0)

    # Collapse the species groups; only the selected group is non-zero.
    out = y[:, 0:feat]
    for g in range(1, n_groups):
        out = out + y[:, g * feat:(g + 1) * feat]
    o_ref[...] = out.astype(o_ref.dtype)


def gj_forward(rho, symbols, species_vals, weights, biases, *,
               row_tile=512, mxu_dtype=jnp.bfloat16):
    """rho: (NTA, nmax, lmax); symbols: (NTA,) int; species_vals: (S,) int;
    weights: (S, F, F); biases: (S, F).  Returns coeff: (NTA, F), F=nmax*lmax."""
    NTA, nmax, lmax = rho.shape
    F = nmax * lmax
    S = int(species_vals.shape[0])

    # --- fuse per-species Linears into one lane-dense weight slab -------------
    # W_fused[:, s*F:(s+1)*F] = weights[s]; pad the species axis so the fused
    # hidden dim is a multiple of 128 lanes (padded groups have zero W and b).
    g = 128 // math.gcd(F, 128)
    n_groups = _round_up(S, g)
    if n_groups * F * F * 4 > (8 << 20):     # avoid absurd padding for awkward F
        n_groups = S
    N_fused = n_groups * F

    w_fused = jnp.zeros((F, N_fused), dtype=mxu_dtype)
    w_fused = w_fused.at[:, : S * F].set(
        jnp.transpose(weights, (1, 0, 2)).reshape(F, S * F).astype(mxu_dtype))
    b_fused = jnp.zeros((1, N_fused), dtype=jnp.float32)
    b_fused = b_fused.at[:, : S * F].set(
        biases.reshape(1, S * F).astype(jnp.float32))

    # --- symbols -> species group index (S means "not listed" -> stays zero) --
    # NOTE: if a species value were duplicated in species_vals, the first entry
    # wins here (PyTorch's loop would let the last win); species lists are
    # assumed unique.
    matches = (symbols.astype(jnp.int32)[:, None]
               == species_vals.astype(jnp.int32)[None, :])
    sym_idx = jnp.where(matches.any(axis=1),
                        jnp.argmax(matches, axis=1), S).astype(jnp.int32)

    # --- large row tiles; pad NTA instead of asserting divisibility -----------
    tm = min(row_tile, max(8, _round_up(NTA, 8)))
    tm = _round_up(tm, 8)
    n_row_tiles = pl.cdiv(NTA, tm)
    NTA_pad = n_row_tiles * tm

    x = rho.reshape(NTA, F).astype(mxu_dtype)
    if NTA_pad != NTA:
        x = jnp.pad(x, ((0, NTA_pad - NTA), (0, 0)))
        sym_idx = jnp.pad(sym_idx, (0, NTA_pad - NTA), constant_values=S)
    sym2d = sym_idx.reshape(NTA_pad, 1)

    kernel = functools.partial(_gj_kernel, feat=F, n_groups=n_groups)

    coeff = pl.pallas_call(
        kernel,
        out_shape=jax.ShapeDtypeStruct((NTA_pad, F), rho.dtype),
        grid_spec=pltpu.PrefetchScalarGridSpec(
            num_scalar_prefetch=0,
            grid=(n_row_tiles,),
            in_specs=[
                pl.BlockSpec((tm, 1), lambda i: (i, 0)),        # species group idx
                pl.BlockSpec((tm, F), lambda i: (i, 0)),        # x rows
                pl.BlockSpec((F, N_fused), lambda i: (0, 0)),   # W_fused (resident)
                pl.BlockSpec((1, N_fused), lambda i: (0, 0)),   # b_fused (resident)
            ],
            out_specs=pl.BlockSpec((tm, F), lambda i: (i, 0)),
        ),
        compiler_params=pltpu.CompilerParams(
            dimension_semantics=("parallel",),
        ),
    )(sym2d, x, w_fused, b_fused)
    return coeff[:NTA]


def _ref_forward(rho, symbols, species_vals, weights, biases):
    """Pure-JAX f32 reference mirroring the PyTorch loop."""
    NTA, nmax, lmax = rho.shape
    F = nmax * lmax
    x = rho.reshape(NTA, F).astype(jnp.float32)
    coeff = jnp.zeros((NTA, F), dtype=rho.dtype)
    for si in range(species_vals.shape[0]):
        mask = (symbols == species_vals[si])[:, None]
        y = x @ weights[si].astype(jnp.float32) + biases[si][None, :]
        coeff = jnp.where(mask, y.astype(coeff.dtype), coeff)
    return coeff


if __name__ == "__main__":
    # Small shapes consistent with the module.  NTA deliberately not a multiple
    # of 8 to exercise the padding path.
    NTA, nmax, lmax = 19, 4, 8
    F = nmax * lmax
    species_vals = jnp.array([1, 6, 8], dtype=jnp.int32)   # e.g. H, C, O
    S = species_vals.shape[0]

    key = jax.random.PRNGKey(0)
    k_rho, k_sym, k_w, k_b = jax.random.split(key, 4)

    rho = jax.random.normal(k_rho, (NTA, nmax, lmax), dtype=jnp.float32)
    sym_pick = jax.random.randint(k_sym, (NTA,), 0, S)
    symbols = species_vals[sym_pick].astype(jnp.int32)
    symbols = symbols.at[0].set(99)   # not in species list -> row 0 stays zero

    weights = 0.05 * jax.random.normal(k_w, (S, F, F), dtype=jnp.float32)
    biases = 0.05 * jax.random.normal(k_b, (S, F), dtype=jnp.float32)

    out = gj_forward(rho, symbols, species_vals, weights, biases)
    out = jax.block_until_ready(out)

    ref = _ref_forward(rho, symbols, species_vals, weights, biases)
    assert out.shape == (NTA, F)
    # bf16 MXU operands vs f32 reference -> loose tolerance
    assert jnp.allclose(out, ref, atol=2e-2, rtol=2e-2), "mismatch vs reference"
    assert jnp.allclose(out[0], 0.0), "unlisted species row should stay zero"

    print("KERNEL_OK")
</pallas_src>

<mosaic_0001>
module attributes {stable_mosaic.version = 11 : i64} {
  func.func @_gj_kernel(%arg0: i32, %arg1: memref<24x1xi32, #tpu.memory_space<vmem>>, %arg2: memref<24x32xbf16, #tpu.memory_space<vmem>>, %arg3: memref<32x128xbf16, #tpu.memory_space<vmem>>, %arg4: memref<1x128xf32, #tpu.memory_space<vmem>>, %arg5: memref<24x32xf32, #tpu.memory_space<vmem>>) attributes {dimension_semantics = [#tpu.dimension_semantics<parallel>], iteration_bounds = array<i64: 1>, scalar_prefetch = 0 : i64, scratch_operands = 0 : i64, tpu.core_type = #tpu.core_type<tc>, window_params = [{transform_indices = @transform_0, window_bounds = array<i64: 24, 1>}, {transform_indices = @transform_1, window_bounds = array<i64: 24, 32>}, {pipeline_mode = #tpu.pipeline_mode<synchronous>, transform_indices = @transform_2, window_bounds = array<i64: 32, 128>}, {pipeline_mode = #tpu.pipeline_mode<synchronous>, transform_indices = @transform_3, window_bounds = array<i64: 1, 128>}, {transform_indices = @transform_4, window_bounds = array<i64: 24, 32>}]} {
    %c0 = arith.constant 0 : index
    %c0_0 = arith.constant 0 : index
    %0 = vector.load %arg2[%c0, %c0_0] : memref<24x32xbf16, #tpu.memory_space<vmem>>, vector<24x32xbf16>
    %c0_1 = arith.constant 0 : index
    %c0_2 = arith.constant 0 : index
    %1 = vector.load %arg3[%c0_1, %c0_2] : memref<32x128xbf16, #tpu.memory_space<vmem>>, vector<32x128xbf16>
    %cst = arith.constant dense<0.000000e+00> : vector<24x128xf32>
    %2 = tpu.matmul %0, %1, %cst {dimension_numbers = #tpu.dot_dimension_numbers<[1], [0], [0], [1], [0, 0, 1, 1], [], []>} : vector<24x32xbf16>, vector<32x128xbf16>, vector<24x128xf32> -> vector<24x128xf32>
    %c0_3 = arith.constant 0 : index
    %c0_4 = arith.constant 0 : index
    %3 = vector.load %arg4[%c0_3, %c0_4] : memref<1x128xf32, #tpu.memory_space<vmem>>, vector<1x128xf32>
    %4 = vector.broadcast %3 : vector<1x128xf32> to vector<24x128xf32>
    %5 = arith.addf %2, %4 : vector<24x128xf32>
    %c0_5 = arith.constant 0 : index
    %c0_6 = arith.constant 0 : index
    %6 = vector.load %arg1[%c0_5, %c0_6] : memref<24x1xi32, #tpu.memory_space<vmem>>, vector<24x1xi32>
    %7 = tpu.iota {dimensions = array<i32: 1>} : vector<24x128xi32>
    %c32_i32 = arith.constant 32 : i32
    %8 = vector.broadcast %c32_i32 : i32 to vector<24x1xi32>
    %9 = arith.muli %6, %8 : vector<24x1xi32>
    %10 = vector.broadcast %9 : vector<24x1xi32> to vector<24x128xi32>
    %11 = arith.cmpi sge, %7, %10 : vector<24x128xi32>
    %c32_i32_7 = arith.constant 32 : i32
    %12 = vector.broadcast %c32_i32_7 : i32 to vector<24x1xi32>
    %13 = arith.addi %9, %12 : vector<24x1xi32>
    %14 = vector.broadcast %13 : vector<24x1xi32> to vector<24x128xi32>
    %15 = arith.cmpi slt, %7, %14 : vector<24x128xi32>
    %16 = arith.andi %11, %15 : vector<24x128xi1>
    %cst_8 = arith.constant 0.000000e+00 : f32
    %17 = vector.broadcast %cst_8 : f32 to vector<24x128xf32>
    %18 = arith.select %16, %5, %17 : vector<24x128xi1>, vector<24x128xf32>
    %19 = vector.extract_strided_slice %18 {offsets = [0, 0], sizes = [24, 32], strides = [1, 1]} : vector<24x128xf32> to vector<24x32xf32>
    %20 = vector.extract_strided_slice %18 {offsets = [0, 32], sizes = [24, 32], strides = [1, 1]} : vector<24x128xf32> to vector<24x32xf32>
    %21 = arith.addf %19, %20 : vector<24x32xf32>
    %22 = vector.extract_strided_slice %18 {offsets = [0, 64], sizes = [24, 32], strides = [1, 1]} : vector<24x128xf32> to vector<24x32xf32>
    %23 = arith.addf %21, %22 : vector<24x32xf32>
    %24 = vector.extract_strided_slice %18 {offsets = [0, 96], sizes = [24, 32], strides = [1, 1]} : vector<24x128xf32> to vector<24x32xf32>
    %25 = arith.addf %23, %24 : vector<24x32xf32>
    %c0_9 = arith.constant 0 : index
    %c0_10 = arith.constant 0 : index
    %26 = vector.load %arg5[%c0_9, %c0_10] : memref<24x32xf32, #tpu.memory_space<vmem>>, vector<24x32xf32>
    tpu.vector_store %arg5[%c0_9, %c0_10], %25 {strides = array<i32>} : memref<24x32xf32, #tpu.memory_space<vmem>>, vector<24x32xf32>,
    return
  }
  func.func @transform_0(%arg0: i32) -> (i32, i32) {
    %c0_i32 = arith.constant 0 : i32
    %c0_i32_0 = arith.constant 0 : i32
    return %arg0, %c0_i32 : i32, i32
  }
  func.func @transform_1(%arg0: i32) -> (i32, i32) {
    %c0_i32 = arith.constant 0 : i32
    %c0_i32_0 = arith.constant 0 : i32
    return %arg0, %c0_i32 : i32, i32
  }
  func.func @transform_2(%arg0: i32) -> (i32, i32) {
    %c0_i32 = arith.constant 0 : i32
    %c0_i32_0 = arith.constant 0 : i32
    %c0_i32_1 = arith.constant 0 : i32
    return %c0_i32, %c0_i32_0 : i32, i32
  }
  func.func @transform_3(%arg0: i32) -> (i32, i32) {
    %c0_i32 = arith.constant 0 : i32
    %c0_i32_0 = arith.constant 0 : i32
    %c0_i32_1 = arith.constant 0 : i32
    return %c0_i32, %c0_i32_0 : i32, i32
  }
  func.func @transform_4(%arg0: i32) -> (i32, i32) {
    %c0_i32 = arith.constant 0 : i32
    %c0_i32_0 = arith.constant 0 : i32
    return %arg0, %c0_i32 : i32, i32
  }
}

</mosaic_0001>

<llo_original>
// kernel: tpu_custom_call.1
$region0: #{tpu_custom_call.1}
  #allocation0 [shape = 'u32[]', space=smem, size = 0x4, offset = 0x4, fixed_abs, tag = 'smem constant byte address 0x4 - core index']
  #allocation1 [shape = 'u32[144,128]{1,0:T(1,128)}', space=vmem, size = 0x12000, scoped, tag = 'internal scratch']
  %s0 = inlined_call_operand.vmem [shape: s32[24,1], index: 0, kind: input, shape index: {}]
  %s1 = inlined_call_operand.vmem [shape: bf16[24,32], index: 1, kind: input, shape index: {}]
  %s2 = inlined_call_operand.vmem [shape: bf16[32,128], index: 2, kind: input, shape index: {}]
  %s3 = inlined_call_operand.vmem [shape: f32[1,128], index: 3, kind: input, shape index: {}]
  %s4 = inlined_call_operand.hbm [shape: f32[24,32], index: 4, kind: output, shape index: {}]
  %s5 = sld [smem:[#allocation0]]
  $region26: #{tpu_custom_call.1} parent=0
    _
  %s7 = ssub.s32 1, %s5
  %s8 = scalar_select 0, %s7, %s5
  $region1: #{tpu_custom_call.1} parent=0
    #allocation2 [shape = 'u8[12288]{0}', space=vmem, size = 0x3000, scoped, tag = 'output window, operand 0, single buffered']
    #allocation3 [shape = 's32[1]{0}', space=sflag, size = 0x4, scoped, tag = 'scoped memory for tpu_custom_call.1']
    %9 = vsyncpa [#allocation3], 0
    // Predicated region
    $region2: #{tpu_custom_call.1} parent=1 // pred_check
      _
    $region3: #{tpu_custom_call.1} parent=1 // pred_check_branch
      %11 = sbr.rel (0) target = $region5
    $region4: #{tpu_custom_call.1} parent=1 // pred_region
      _
    $region5: #{tpu_custom_call.1} parent=1 // pred_fallthru
      _
    // Predicated region
    $region6: #{tpu_custom_call.1} parent=1 // pred_check
      _
    $region7: #{tpu_custom_call.1} parent=1 // pred_check_branch
      %13 = sbr.rel (0) target = $region9
    $region8: #{tpu_custom_call.1} parent=1 // pred_region
      _
    $region9: #{tpu_custom_call.1} parent=1 // pred_fallthru
      _
    // Predicated region
    $region10: #{tpu_custom_call.1} parent=1 // pred_check
      _
    $region11: #{tpu_custom_call.1} parent=1 // pred_check_branch
      %15 = sbr.rel (0) target = $region13
    $region12: #{tpu_custom_call.1} parent=1 // pred_region
      _
    $region13: #{tpu_custom_call.1} parent=1 // pred_fallthru
      _
    // Predicated region
    $region14: #{tpu_custom_call.1} parent=1 // pred_check
      _
    $region15: #{tpu_custom_call.1} parent=1 // pred_check_branch
      %17 = sbr.rel (0) target = $region17
    $region16: #{tpu_custom_call.1} parent=1 // pred_region
      _
    $region17: #{tpu_custom_call.1} parent=1 // pred_fallthru
      _
    %v19 = vld [vmem:[%s1] sm:$0xf]
    %v20 = vld [vmem:[%s1 + $0x4] sm:$0xf]
    %v21 = vld [vmem:[%s1 + $0x8] sm:$0xf]
    %v22 = vld [vmem:[%s2] sm:$0xf]
    %v23 = vld [vmem:[%s2 + $0x4] sm:$0xf]
    %v24 = vld [vmem:[%s2 + $0x8] sm:$0xf]
    %v25 = vld [vmem:[%s2 + $0xc] sm:$0xf]
    %v26 = vld [vmem:[%s3] sm:$0x1]
    %v28 = vlaneseq
    %v29 = vshrl.u32 %v28, 7
    %v30 = vsub.s32 0, %v29
    %v31 = vrot.slane %v26, %v30
    %v36 = vunpack.c.l.b16 %v19
    %v37 = vunpack.c.l.b16 %v20
    %v38 = vunpack.c.l.b16 %v21
    %v39 = vpack.c.b16 %v37, %v36
    %v40 = vpack.c.b16 %v38, %v38
    %v45 = vunpack.c.l.b16 %v22
    %v46 = vunpack.c.l.b16 %v23
    %v47 = vunpack.c.l.b16 %v24
    %v48 = vunpack.c.l.b16 %v25
    %v49 = vpack.c.b16 %v46, %v45
    %v50 = vpack.c.b16 %v48, %v47
    %vm53 = vcmask 261120
    %v55 = vsel %vm53, %v39, 0
    %v58 = vsel %vm53, %v40, 0
    %60 = vmatprep.subr.bf16.mxu0 0
    %61 = vmatpush1.bf16.msra.mxu0 %v49
    %62 = vmatprep.subr.bf16.mxu0 0
    %63 = vmatpush1.bf16.msra.mxu0 %v50
    %64 = vmatprep.subr.bf16.mxu0 0
    %65 = vmatpush1.bf16.msra.mxu0 0
    %66 = vmatprep.subr.bf16.mxu0 0
    %67 = vmatpush1.bf16.msra.mxu0 0
    %68 = vmatprep.subr.bf16.mxu0 0
    %69 = vmatpush1.bf16.msra.mxu0 0
    %70 = vmatprep.subr.bf16.mxu0 0
    %71 = vmatpush1.bf16.msra.mxu0 0
    %72 = vmatprep.subr.bf16.mxu0 0
    %73 = vmatpush1.bf16.msra.mxu0 0
    %74 = vmatprep.subr.bf16.mxu0 0
    %75 = vmatpush1.bf16.msra.mxu0 0
    %76 = vmatprep.subr.bf16.mxu0 0
    %77 = vmatpush1.bf16.msra.mxu0 0
    %78 = vmatprep.subr.bf16.mxu0 0
    %79 = vmatpush1.bf16.msra.mxu0 0
    %80 = vmatprep.subr.bf16.mxu0 0
    %81 = vmatpush1.bf16.msra.mxu0 0
    %82 = vmatprep.subr.bf16.mxu0 0
    %83 = vmatpush1.bf16.msra.mxu0 0
    %84 = vmatprep.subr.bf16.mxu0 0
    %85 = vmatpush1.bf16.msra.mxu0 0
    %86 = vmatprep.subr.bf16.mxu0 0
    %87 = vmatpush1.bf16.msra.mxu0 0
    %88 = vmatprep.subr.bf16.mxu0 0
    %89 = vmatpush1.bf16.msra.mxu0 0
    %90 = vmatprep.subr.bf16.mxu0 0
    %91 = vmatpush1.bf16.msra.mxu0 0
    %92 = vmatprep.mubr.bf16.mxu0 0
    %93 = vmatmul.mubr.bf16.gmra.mrb[0].mxu0 %v55
    %v94 = vpop.f32.mrb[0].mxu0
    %v95 = vadd.f32 %v31, %v94
    %v96 = vpop.f32.mrb[0].mxu0
    %v97 = vpop.f32.mrb[0].mxu0
    %v98 = vadd.f32 %v31, %v97
    %v99 = vpop.f32.mrb[0].mxu0
    %100 = vmatprep.mubr.bf16.mxu0 0
    %101 = vmatmul.mubr.bf16.gmra.mrb[0].mxu0 %v58
    %v102 = vpop.f32.mrb[0].mxu0
    %v103 = vadd.f32 %v31, %v102
    %v104 = vpop.f32.mrb[0].mxu0
    %v105 = vpop.f32.mrb[0].mxu0
    %v106 = vpop.f32.mrb[0].mxu0
    %107 = vdwg.mxu0
    %v108 = vld [vmem:[%s0] sm:$0xff]
    %v109 = vld [vmem:[%s0 + $0x8] sm:$0xff]
    %v110 = vld [vmem:[%s0 + $0x10] sm:$0xff]
    %v111 = vlaneseq
    %v112 = vand.u32 %v111, 127
    %v113 = vmul.u32 %v108, 32
    %v114 = vmul.u32 %v109, 32
    %v115 = vmul.u32 %v110, 32
    %116 = vset.pattern.permute.xlu0 0
    %117 = vperm.xlu0 %116, %v113
    %v118 = vpop.permute.xlu0 %117
    %119 = vset.pattern.permute.xlu0 0
    %120 = vperm.xlu0 %119, %v114
    %v121 = vpop.permute.xlu0 %120
    %122 = vset.pattern.permute.xlu0 0
    %123 = vperm.xlu0 %122, %v115
    %v124 = vpop.permute.xlu0 %123
    %vm125 = vcmp.ge.s32.totalorder %v112, %v118
    %vm126 = vcmp.ge.s32.totalorder %v112, %v121
    %vm127 = vcmp.ge.s32.totalorder %v112, %v124
    %v128 = vadd.s32 %v113, 32
    %v129 = vadd.s32 %v114, 32
    %v130 = vadd.s32 %v115, 32
    %131 = vset.pattern.permute.xlu0 0
    %132 = vperm.xlu0 %131, %v128
    %v133 = vpop.permute.xlu0 %132
    %134 = vset.pattern.permute.xlu0 0
    %135 = vperm.xlu0 %134, %v129
    %v136 = vpop.permute.xlu0 %135
    %137 = vset.pattern.permute.xlu0 0
    %138 = vperm.xlu0 %137, %v130
    %v139 = vpop.permute.xlu0 %138
    %vm140 = vcmp.lt.s32.totalorder %v112, %v133
    %vm141 = vcmp.lt.s32.totalorder %v112, %v136
    %vm142 = vcmp.lt.s32.totalorder %v112, %v139
    %vm143 = vmand %vm125, %vm140
    %vm144 = vmand %vm126, %vm141
    %vm145 = vmand %vm127, %vm142
    %v146 = vsel %vm143, %v95, 0.0
    %v147 = vsel %vm144, %v98, 0.0
    %v148 = vsel %vm145, %v103, 0.0
    %152 = vrot.lane.b32.xlu0 %v146, 96
    %v153 = vpop.permute.xlu0 %152
    %154 = vrot.lane.b32.xlu0 %v147, 96
    %v155 = vpop.permute.xlu0 %154
    %156 = vrot.lane.b32.xlu0 %v148, 96
    %v157 = vpop.permute.xlu0 %156
    %v161 = vadd.f32 %v146, %v153
    %v162 = vadd.f32 %v147, %v155
    %v163 = vadd.f32 %v148, %v157
    %164 = vrot.lane.b32.xlu0 %v146, 64
    %v165 = vpop.permute.xlu0 %164
    %166 = vrot.lane.b32.xlu0 %v147, 64
    %v167 = vpop.permute.xlu0 %166
    %168 = vrot.lane.b32.xlu0 %v148, 64
    %v169 = vpop.permute.xlu0 %168
    %v173 = vadd.f32 %v161, %v165
    %v174 = vadd.f32 %v162, %v167
    %v175 = vadd.f32 %v163, %v169
    %176 = vrot.lane.b32.xlu0 %v146, 32
    %v177 = vpop.permute.xlu0 %176
    %178 = vrot.lane.b32.xlu0 %v147, 32
    %v179 = vpop.permute.xlu0 %178
    %180 = vrot.lane.b32.xlu0 %v148, 32
    %v181 = vpop.permute.xlu0 %180
    %v185 = vadd.f32 %v173, %v177
    %v186 = vadd.f32 %v174, %v179
    %v187 = vadd.f32 %v175, %v181
    %188 = vst.msk [vmem:[#allocation2] sm:$0xff] %vm53, %v185
    %189 = vst.msk [vmem:[#allocation2 + $0x8] sm:$0xff] %vm53, %v186
    %190 = vst.msk [vmem:[#allocation2 + $0x10] sm:$0xff] %vm53, %v187
    // Predicated region
    $region18: #{tpu_custom_call.1} parent=1 // pred_check
      _
    $region19: #{tpu_custom_call.1} parent=1 // pred_check_branch
      %192 = sbr.rel (0) target = $region21
    $region20: #{tpu_custom_call.1} parent=1 // pred_region
      %s194 = ssub.s32 384, 384
      %195 = vsyncadd [#allocation3], %s194
      %s196 = sshll.u32 [#allocation2], 4
      %s197 = int_to_ptr.vmem [resolvable:$true] %s196
      %202 = dma.vmem_to_hbm [thread:$0]  %s197, 384, %s4, [#allocation3], 128, 128, 8
    $region21: #{tpu_custom_call.1} parent=1 // pred_fallthru
      _
    // Predicated region
    $region22: #{tpu_custom_call.1} parent=1 // pred_check
      _
    $region23: #{tpu_custom_call.1} parent=1 // pred_check_branch
      %204 = sbr.rel (0) target = $region25
    $region24: #{tpu_custom_call.1} parent=1 // pred_region
      %205 = dma.done [#allocation3], 384
    $region25: #{tpu_custom_call.1} parent=1 // pred_fallthru
      _
    %206 = vsyncpa [#allocation3], 1

</llo_original>
